<compile_context>
chip_gen: v6e
topology: v6e:2x2x1
jax: 0.10.0
libtpu: 0.0.40
codegen_flags: <defaults>
</compile_context>

<pallas_src>
import jax
import jax.numpy as jnp
from jax import lax
from jax.experimental import pallas as pl
from jax.experimental.pallas import tpu as pltpu

BN_EPS = 1e-5
_MiB = 1024 * 1024
_VMEM_CAP = 48 * _MiB          # safe on v7x (64 MiB physical per TC)
_RESIDENT_BUDGET = 44 * _MiB   # resident-support path budget before K-tiling


def _round_up(x, m):
    return ((x + m - 1) // m) * m


def _choose_tm(n):
    # Largest row tile in {512, 256, 128} that still yields >= 2 grid steps
    # (keeps both v7x TensorCores busy).  Bigger tiles = fewer grid steps and
    # larger DMAs on the HBM-bound adj stream (v5e/v6e benefit most).
    for tm in (512, 256, 128):
        if _round_up(n, tm) // tm >= 2:
            return tm
    return 128


def gcn_kernel_resident(adj_ref, sup_ref, scale_ref, shift_ref, o_ref):
    # Dominant matmul: (TM, Np) bf16 @ (Np, Hp) bf16 -> f32 accumulate on MXU.
    acc = jnp.dot(adj_ref[...], sup_ref[...],
                  preferred_element_type=jnp.float32)
    # Fused epilogue: folded (bias + BatchNorm) scale/shift, then ReLU.
    out = acc * scale_ref[...] + shift_ref[...]
    o_ref[...] = jnp.maximum(out, 0.0).astype(o_ref.dtype)


def gcn_kernel_ktiled(adj_ref, sup_ref, scale_ref, shift_ref, o_ref, acc_ref):
    k = pl.program_id(1)

    @pl.when(k == 0)
    def _():
        acc_ref[...] = jnp.zeros_like(acc_ref)

    acc_ref[...] += jnp.dot(adj_ref[...], sup_ref[...],
                            preferred_element_type=jnp.float32)

    @pl.when(k == pl.num_programs(1) - 1)
    def _():
        out = acc_ref[...] * scale_ref[...] + shift_ref[...]
        o_ref[...] = jnp.maximum(out, 0.0).astype(o_ref.dtype)


def gcn_forward(x, adj, weight, bias, gamma, beta, run_mean, run_var,
                *, lane=128, tk=512):
    """Inference GCN layer: relu(BN(adj @ (x @ W) + b)); dropout is identity."""
    N = x.shape[0]
    H = weight.shape[1]
    out_dtype = x.dtype
    out_bytes = jnp.dtype(out_dtype).itemsize

    # ---- plain-XLA prework (negligible flops vs adj @ support) -------------
    support = jnp.dot(x, weight)                              # (N, H) f32

    # Fold GraphConvolution bias + BatchNorm1d (running stats) into scale/shift:
    #   y = (adj@support + bias - mean) * gamma/sqrt(var+eps) + beta
    #     = (adj@support) * scale + shift
    scale = gamma * lax.rsqrt(run_var + BN_EPS)               # (H,)
    shift = beta + (bias - run_mean) * scale                  # (H,)

    # ---- tiling / padding choices -------------------------------------------
    tm = _choose_tm(N)
    Hp = _round_up(H, lane)
    Np = _round_up(N, tm)

    resident_vmem = (2 * tm * Np * 2            # adj row tile, double-buffered bf16
                     + Np * Hp * 2              # support, single-buffered bf16
                     + 2 * tm * Hp * out_bytes  # output, double-buffered
                     + 4 * Hp * 4)              # scale/shift
    k_tiled = resident_vmem > _RESIDENT_BUDGET
    if k_tiled:
        tm = max(tm, tk)                        # fewer support re-reads per row tile
        Np = _round_up(N, max(tm, tk))          # Np must divide by both tm and tk

    # ---- cast to bf16 *before* padding (adj is the dominant HBM stream) ----
    adj_bf = adj.astype(jnp.bfloat16)
    sup_bf = support.astype(jnp.bfloat16)
    if Np != N:
        adj_bf = jnp.pad(adj_bf, ((0, Np - N), (0, Np - N)))
        sup_bf = jnp.pad(sup_bf, ((0, Np - N), (0, 0)))
    if Hp != H:
        sup_bf = jnp.pad(sup_bf, ((0, 0), (0, Hp - H)))
    scale_p = jnp.zeros((1, Hp), jnp.float32).at[0, :H].set(scale)
    shift_p = jnp.zeros((1, Hp), jnp.float32).at[0, :H].set(shift)

    flops = 2 * Np * Np * Hp

    if not k_tiled:
        # -------- resident-support path (support fits in VMEM) --------------
        grid = (Np // tm,)
        vmem_limit = int(min(_VMEM_CAP, max(32 * _MiB, 2 * resident_vmem)))
        vec_spec = pl.BlockSpec((1, Hp), lambda i: (0, 0),
                                pipeline_mode=pl.Buffered(1))
        bytes_accessed = (Np * Np * 2 + Np * Hp * 2
                          + Np * Hp * out_bytes + 4 * Hp * 4)
        out_p = pl.pallas_call(
            gcn_kernel_resident,
            out_shape=jax.ShapeDtypeStruct((Np, Hp), out_dtype),
            grid=grid,
            in_specs=[
                pl.BlockSpec((tm, Np), lambda i: (i, 0)),     # adj row tile (dbl-buf)
                pl.BlockSpec((Np, Hp), lambda i: (0, 0),
                             pipeline_mode=pl.Buffered(1)),   # support, resident
                vec_spec,                                     # folded BN scale
                vec_spec,                                     # folded BN shift (+bias)
            ],
            out_specs=pl.BlockSpec((tm, Hp), lambda i: (i, 0)),
            compiler_params=pltpu.CompilerParams(
                dimension_semantics=("parallel",),
                vmem_limit_bytes=vmem_limit,
            ),
            cost_estimate=pl.CostEstimate(
                flops=flops, transcendentals=0, bytes_accessed=bytes_accessed),
        )(adj_bf, sup_bf, scale_p, shift_p)
    else:
        # -------- K-tiled fallback (large graphs; v7x 64 MiB VMEM) ----------
        grid = (Np // tm, Np // tk)
        ktiled_vmem = (2 * tm * tk * 2 + 2 * tk * Hp * 2
                       + tm * Hp * 4 + 2 * tm * Hp * out_bytes + 4 * Hp * 4)
        vmem_limit = int(min(_VMEM_CAP, max(32 * _MiB, 2 * ktiled_vmem)))
        vec_spec = pl.BlockSpec((1, Hp), lambda i, k: (0, 0),
                                pipeline_mode=pl.Buffered(1))
        bytes_accessed = (Np * Np * 2                       # adj once
                          + (Np // tm) * Np * Hp * 2        # support per row tile
                          + Np * Hp * out_bytes + 4 * Hp * 4)
        out_p = pl.pallas_call(
            gcn_kernel_ktiled,
            out_shape=jax.ShapeDtypeStruct((Np, Hp), out_dtype),
            grid=grid,
            in_specs=[
                pl.BlockSpec((tm, tk), lambda i, k: (i, k)),  # adj tile
                pl.BlockSpec((tk, Hp), lambda i, k: (k, 0)),  # support K tile
                vec_spec,                                     # folded BN scale
                vec_spec,                                     # folded BN shift (+bias)
            ],
            out_specs=pl.BlockSpec((tm, Hp), lambda i, k: (i, 0)),
            scratch_shapes=[pltpu.VMEM((tm, Hp), jnp.float32)],
            compiler_params=pltpu.CompilerParams(
                dimension_semantics=("parallel", "arbitrary"),
                vmem_limit_bytes=vmem_limit,
            ),
            cost_estimate=pl.CostEstimate(
                flops=flops, transcendentals=0, bytes_accessed=bytes_accessed),
        )(adj_bf, sup_bf, scale_p, shift_p)

    if Np == N and Hp == H:
        return out_p
    return out_p[:N, :H]


if __name__ == "__main__":
    key = jax.random.PRNGKey(0)
    N, nfeat, nhid = 256, 16, 32
    ks = jax.random.split(key, 4)

    # Node features.
    x = jax.random.normal(ks[0], (N, nfeat), jnp.float32)

    # Dense row-normalized symmetric adjacency with self-loops.
    a = jax.random.uniform(ks[1], (N, N), jnp.float32)
    adj = (a + a.T) * 0.5 + jnp.eye(N, dtype=jnp.float32)
    adj = adj / adj.sum(axis=1, keepdims=True)

    # GraphConvolution parameters (Kipf-style uniform(-1/sqrt(H), 1/sqrt(H))).
    bound = 1.0 / (nhid ** 0.5)
    weight = jax.random.uniform(ks[2], (nfeat, nhid), jnp.float32,
                                minval=-bound, maxval=bound)
    bias = jax.random.uniform(ks[3], (nhid,), jnp.float32,
                              minval=-bound, maxval=bound)

    # BatchNorm1d parameters / running stats (PyTorch defaults).
    gamma = jnp.ones((nhid,), jnp.float32)
    beta = jnp.zeros((nhid,), jnp.float32)
    run_mean = jnp.zeros((nhid,), jnp.float32)
    run_var = jnp.ones((nhid,), jnp.float32)

    out = gcn_forward(x, adj, weight, bias, gamma, beta, run_mean, run_var)
    jax.block_until_ready(out)
    assert out.shape == (N, nhid) and out.dtype == jnp.float32
    assert bool(jnp.all(out >= 0.0))  # ReLU applied

    # Cross-check against a plain-XLA reference of the same (bf16-matmul) math.
    ref = jnp.maximum(
        jnp.dot(adj.astype(jnp.bfloat16), (x @ weight).astype(jnp.bfloat16),
                preferred_element_type=jnp.float32)
        * (gamma * lax.rsqrt(run_var + BN_EPS))
        + (beta + (bias - run_mean) * gamma * lax.rsqrt(run_var + BN_EPS)),
        0.0)
    assert bool(jnp.allclose(out, ref, atol=2e-2, rtol=2e-2))
    print("KERNEL_OK")
</pallas_src>

<mosaic_0001>
module attributes {stable_mosaic.version = 11 : i64} {
  func.func @gcn_kernel_resident(%arg0: i32, %arg1: memref<128x256xbf16, #tpu.memory_space<vmem>>, %arg2: memref<256x128xbf16, #tpu.memory_space<vmem>>, %arg3: memref<1x128xf32, #tpu.memory_space<vmem>>, %arg4: memref<1x128xf32, #tpu.memory_space<vmem>>, %arg5: memref<128x128xf32, #tpu.memory_space<vmem>>) attributes {dimension_semantics = [#tpu.dimension_semantics<parallel>], iteration_bounds = array<i64: 2>, scalar_prefetch = 0 : i64, scratch_operands = 0 : i64, tpu.core_type = #tpu.core_type<tc>, window_params = [{transform_indices = @transform_0, window_bounds = array<i64: 128, 256>}, {pipeline_mode = #tpu.pipeline_mode<synchronous>, transform_indices = @transform_1, window_bounds = array<i64: 256, 128>}, {pipeline_mode = #tpu.pipeline_mode<synchronous>, transform_indices = @transform_2, window_bounds = array<i64: 1, 128>}, {pipeline_mode = #tpu.pipeline_mode<synchronous>, transform_indices = @transform_3, window_bounds = array<i64: 1, 128>}, {transform_indices = @transform_4, window_bounds = array<i64: 128, 128>}]} {
    %c0 = arith.constant 0 : index
    %c0_0 = arith.constant 0 : index
    %0 = vector.load %arg1[%c0, %c0_0] : memref<128x256xbf16, #tpu.memory_space<vmem>>, vector<128x256xbf16>
    %c0_1 = arith.constant 0 : index
    %c0_2 = arith.constant 0 : index
    %1 = vector.load %arg2[%c0_1, %c0_2] : memref<256x128xbf16, #tpu.memory_space<vmem>>, vector<256x128xbf16>
    %cst = arith.constant dense<0.000000e+00> : vector<128x128xf32>
    %2 = tpu.matmul %0, %1, %cst {dimension_numbers = #tpu.dot_dimension_numbers<[1], [0], [0], [1], [0, 0, 1, 1], [], []>} : vector<128x256xbf16>, vector<256x128xbf16>, vector<128x128xf32> -> vector<128x128xf32>
    %c0_3 = arith.constant 0 : index
    %c0_4 = arith.constant 0 : index
    %3 = vector.load %arg3[%c0_3, %c0_4] : memref<1x128xf32, #tpu.memory_space<vmem>>, vector<1x128xf32>
    %4 = vector.broadcast %3 : vector<1x128xf32> to vector<128x128xf32>
    %5 = arith.mulf %2, %4 : vector<128x128xf32>
    %c0_5 = arith.constant 0 : index
    %c0_6 = arith.constant 0 : index
    %6 = vector.load %arg4[%c0_5, %c0_6] : memref<1x128xf32, #tpu.memory_space<vmem>>, vector<1x128xf32>
    %7 = vector.broadcast %6 : vector<1x128xf32> to vector<128x128xf32>
    %8 = arith.addf %5, %7 : vector<128x128xf32>
    %cst_7 = arith.constant 0.000000e+00 : f32
    %9 = vector.broadcast %cst_7 : f32 to vector<128x128xf32>
    %10 = arith.maximumf %8, %9 : vector<128x128xf32>
    %c0_8 = arith.constant 0 : index
    %c0_9 = arith.constant 0 : index
    %11 = vector.load %arg5[%c0_8, %c0_9] : memref<128x128xf32, #tpu.memory_space<vmem>>, vector<128x128xf32>
    tpu.vector_store %arg5[%c0_8, %c0_9], %10 {strides = array<i32>} : memref<128x128xf32, #tpu.memory_space<vmem>>, vector<128x128xf32>,
    return
  }
  func.func @transform_0(%arg0: i32) -> (i32, i32) {
    %c0_i32 = arith.constant 0 : i32
    %c0_i32_0 = arith.constant 0 : i32
    return %arg0, %c0_i32 : i32, i32
  }
  func.func @transform_1(%arg0: i32) -> (i32, i32) {
    %c0_i32 = arith.constant 0 : i32
    %c0_i32_0 = arith.constant 0 : i32
    %c0_i32_1 = arith.constant 0 : i32
    return %c0_i32, %c0_i32_0 : i32, i32
  }
  func.func @transform_2(%arg0: i32) -> (i32, i32) {
    %c0_i32 = arith.constant 0 : i32
    %c0_i32_0 = arith.constant 0 : i32
    %c0_i32_1 = arith.constant 0 : i32
    return %c0_i32, %c0_i32_0 : i32, i32
  }
  func.func @transform_3(%arg0: i32) -> (i32, i32) {
    %c0_i32 = arith.constant 0 : i32
    %c0_i32_0 = arith.constant 0 : i32
    %c0_i32_1 = arith.constant 0 : i32
    return %c0_i32, %c0_i32_0 : i32, i32
  }
  func.func @transform_4(%arg0: i32) -> (i32, i32) {
    %c0_i32 = arith.constant 0 : i32
    %c0_i32_0 = arith.constant 0 : i32
    return %arg0, %c0_i32 : i32, i32
  }
}

</mosaic_0001>

<llo_original>
// kernel: tpu_custom_call.1
$region0: #{tpu_custom_call.1}
  #allocation0 [shape = 'u32[]', space=smem, size = 0x4, offset = 0x4, fixed_abs, tag = 'smem constant byte address 0x4 - core index']
  #allocation1 [shape = 'u32[144,128]{1,0:T(1,128)}', space=vmem, size = 0x12000, scoped, tag = 'internal scratch']
  %s0 = inlined_call_operand.hbm [shape: bf16[256,256], index: 0, kind: input, shape index: {}]
  %s1 = inlined_call_operand.hbm [shape: bf16[256,128], index: 1, kind: input, shape index: {}]
  %s2 = inlined_call_operand.vmem [shape: f32[1,128], index: 2, kind: input, shape index: {}]
  %s3 = inlined_call_operand.vmem [shape: f32[1,128], index: 3, kind: input, shape index: {}]
  %s4 = inlined_call_operand.hbm [shape: f32[256,128], index: 4, kind: output, shape index: {}]
  %s5 = sld [smem:[#allocation0]]
  $region57: #{tpu_custom_call.1} parent=0
    _
  %s7 = ssub.s32 1, %s5
  %s8 = scalar_select 0, %s7, %s5
  $region1: #{tpu_custom_call.1} parent=0
    #allocation2 [shape = 'u8[131072]{0}', space=vmem, size = 0x20000, scoped, tag = 'input window, operand 0']
    #allocation3 [shape = 's32[2]{0}', space=sflag, size = 0x8, scoped, tag = 'scoped memory for tpu_custom_call.1']
    #allocation4 [shape = 's32[2]{0}', space=sflag, size = 0x8, scoped, tag = 'scoped memory for tpu_custom_call.1']
    #allocation5 [shape = 'u8[65536]{0}', space=vmem, size = 0x10000, scoped, tag = 'input window, operand 1, single buffered']
    #allocation6 [shape = 's32[1]{0}', space=sflag, size = 0x4, scoped, tag = 'scoped memory for tpu_custom_call.1']
    #allocation7 [shape = 'u8[131072]{0}', space=vmem, size = 0x20000, scoped, tag = 'output window, operand 0']
    %9 = vsyncpa [#allocation3], 0
    %s10 = scalar_lea.sflag [#allocation3], 1
    %11 = vsyncpa %s10, 0
    %12 = vsyncpa [#allocation6], 0
    %13 = vsyncpa [#allocation4], 0
    %s14 = scalar_lea.sflag [#allocation4], 1
    %15 = vsyncpa %s14, 0
    loop: start=0, step=1, limit=4
    $region2: #{tpu_custom_call.1} parent=1 // loop_pre_header
      _
    $region3: #{tpu_custom_call.1} parent=1 // loop_header
      %s17 = sphi 0, %s21
      %p18 = scmp.ge.s32.totalorder %s17, 4
      %s27 = sphi 0, %s29
      %s30 = sphi 0, %s27
      %s31 = sphi 0, %s30
      %s47 = sphi 0, %s31
      %s51 = sphi 0, %s51
      %s53 = sphi 0, %s51
      %s54 = sphi 0, %s53
      %s68 = sphi 0, %s54
      %s72 = sphi 0, %s72
      %s74 = sphi 0, %s72
      %s75 = sphi 0, %s74
      %s89 = sphi 0, %s75
      %s93 = sphi 0, %s93
      %s95 = sphi 0, %s93
      %s96 = sphi 0, %s95
      %s110 = sphi 0, %s96
      %s116 = sphi 0, %s118
      %s119 = sphi 0, %s116
      %s120 = sphi 0, %s119
      %s136 = sphi 0, %s120
    $region4: #{tpu_custom_call.1} parent=1 // loop_header_branch
      %20 = sbr.rel (%p18) target = $region8
    $region5: #{tpu_custom_call.1} parent=1 // loop_body
      %s22 = ssub.s32 %s17, 1
      %s23 = ssub.s32 %s17, 2
      %s24 = sadd.s32 %s17, 1
      %s25 = ssub.s32 %s17, %s24
      %p26 = scmp.eq.s32.totalorder %s25, 0
      %s28 = sadd.s32 %s27, 1
      %s29 = scalar_select %p26, %s27, %s28
      %p32 = pneg %p26
      %p33 = scmp.eq.s32.totalorder %s17, 1
      %p34 = por %p32, %p33
      %p35 = scmp.ne.s32.totalorder %s27, %s30
      %p36 = scmp.eq.s32.totalorder %s17, 0
      %p37 = por %p35, %p36
      %p38 = scmp.ne.s32.totalorder %s27, %s30
      %p39 = scmp.eq.s32.totalorder %s22, 1
      %p40 = por %p38, %p39
      %p41 = scmp.ne.s32.totalorder %s30, %s31
      %p42 = scmp.eq.s32.totalorder %s22, 0
      %p43 = por %p41, %p42
      %p44 = scmp.ne.s32.totalorder %s30, %s31
      %p45 = scmp.eq.s32.totalorder %s23, 1
      %p46 = por %p44, %p45
      %p48 = scmp.ne.s32.totalorder %s31, %s47
      %p49 = scmp.eq.s32.totalorder %s23, 0
      %p50 = por %p48, %p49
      %s52 = sadd.s32 %s51, 1
      %p55 = scmp.eq.s32.totalorder %s17, 1
      %p56 = scmp.ne.s32.totalorder %s51, %s53
      %p57 = scmp.eq.s32.totalorder %s17, 0
      %p58 = por %p56, %p57
      %p59 = scmp.ne.s32.totalorder %s51, %s53
      %p60 = scmp.eq.s32.totalorder %s22, 1
      %p61 = por %p59, %p60
      %p62 = scmp.ne.s32.totalorder %s53, %s54
      %p63 = scmp.eq.s32.totalorder %s22, 0
      %p64 = por %p62, %p63
      %p65 = scmp.ne.s32.totalorder %s53, %s54
      %p66 = scmp.eq.s32.totalorder %s23, 1
      %p67 = por %p65, %p66
      %p69 = scmp.ne.s32.totalorder %s54, %s68
      %p70 = scmp.eq.s32.totalorder %s23, 0
      %p71 = por %p69, %p70
      %s73 = sadd.s32 %s72, 1
      %p76 = scmp.eq.s32.totalorder %s17, 1
      %p77 = scmp.ne.s32.totalorder %s72, %s74
      %p78 = scmp.eq.s32.totalorder %s17, 0
      %p79 = por %p77, %p78
      %p80 = scmp.ne.s32.totalorder %s72, %s74
      %p81 = scmp.eq.s32.totalorder %s22, 1
      %p82 = por %p80, %p81
      %p83 = scmp.ne.s32.totalorder %s74, %s75
      %p84 = scmp.eq.s32.totalorder %s22, 0
      %p85 = por %p83, %p84
      %p86 = scmp.ne.s32.totalorder %s74, %s75
      %p87 = scmp.eq.s32.totalorder %s23, 1
      %p88 = por %p86, %p87
      %p90 = scmp.ne.s32.totalorder %s75, %s89
      %p91 = scmp.eq.s32.totalorder %s23, 0
      %p92 = por %p90, %p91
      %s94 = sadd.s32 %s93, 1
      %p97 = scmp.eq.s32.totalorder %s17, 1
      %p98 = scmp.ne.s32.totalorder %s93, %s95
      %p99 = scmp.eq.s32.totalorder %s17, 0
      %p100 = por %p98, %p99
      %p101 = scmp.ne.s32.totalorder %s93, %s95
      %p102 = scmp.eq.s32.totalorder %s22, 1
      %p103 = por %p101, %p102
      %p104 = scmp.ne.s32.totalorder %s95, %s96
      %p105 = scmp.eq.s32.totalorder %s22, 0
      %p106 = por %p104, %p105
      %p107 = scmp.ne.s32.totalorder %s95, %s96
      %p108 = scmp.eq.s32.totalorder %s23, 1
      %p109 = por %p107, %p108
      %p111 = scmp.ne.s32.totalorder %s96, %s110
      %p112 = scmp.eq.s32.totalorder %s23, 0
      %p113 = por %p111, %p112
      %s114 = ssub.s32 %s17, %s24
      %p115 = scmp.eq.s32.totalorder %s114, 0
      %s117 = sadd.s32 %s116, 1
      %s118 = scalar_select %p115, %s116, %s117
      %p121 = pneg %p115
      %p122 = scmp.eq.s32.totalorder %s17, 1
      %p123 = por %p121, %p122
      %p124 = scmp.ne.s32.totalorder %s116, %s119
      %p125 = scmp.eq.s32.totalorder %s17, 0
      %p126 = por %p124, %p125
      %p127 = scmp.ne.s32.totalorder %s116, %s119
      %p128 = scmp.eq.s32.totalorder %s22, 1
      %p129 = por %p127, %p128
      %p130 = scmp.ne.s32.totalorder %s119, %s120
      %p131 = scmp.eq.s32.totalorder %s22, 0
      %p132 = por %p130, %p131
      %p133 = scmp.ne.s32.totalorder %s119, %s120
      %p134 = scmp.eq.s32.totalorder %s23, 1
      %p135 = por %p133, %p134
      %p137 = scmp.ne.s32.totalorder %s120, %s136
      %p138 = scmp.eq.s32.totalorder %s23, 0
      %p139 = por %p137, %p138
      %p140 = scmp.le.s32.totalorder 1, %s17
      %p141 = scmp.lt.s32.totalorder %s17, 3
      %p142 = pnand %p140, %p141
      %p143 = pneg %p142
      // Predicated region
      $region9: #{tpu_custom_call.1} parent=5 // pred_check
        _
      $region10: #{tpu_custom_call.1} parent=5 // pred_check_branch
        %145 = sbr.rel (%p142) target = $region12
      $region11: #{tpu_custom_call.1} parent=5 // pred_region
        %s146 = ssub.s32 %s17, 1
        // Predicated region
        $region13: #{tpu_custom_call.1} parent=11 // pred_check
          %p147 = pneg %p64
        $region14: #{tpu_custom_call.1} parent=11 // pred_check_branch
          %149 = sbr.rel (%p147) target = $region16
        $region15: #{tpu_custom_call.1} parent=11 // pred_region
          %s151 = ssub.s32 2048, 2048
          %152 = vsyncadd [#allocation6], %s151
          %s153 = sshll.u32 [#allocation5], 4
          %s154 = int_to_ptr.vmem [resolvable:$true] %s153
          %159 = dma.hbm_to_vmem [thread:$0]  %s1, 2048, %s154, [#allocation6], 64, 64, 4
        $region16: #{tpu_custom_call.1} parent=11 // pred_fallthru
          _
        // Predicated region
        $region17: #{tpu_custom_call.1} parent=11 // pred_check
          %p160 = pneg %p85
        $region18: #{tpu_custom_call.1} parent=11 // pred_check_branch
          %162 = sbr.rel (%p160) target = $region20
        $region19: #{tpu_custom_call.1} parent=11 // pred_region
          _
        $region20: #{tpu_custom_call.1} parent=11 // pred_fallthru
          _
        // Predicated region
        $region21: #{tpu_custom_call.1} parent=11 // pred_check
          %p163 = pneg %p106
        $region22: #{tpu_custom_call.1} parent=11 // pred_check_branch
          %165 = sbr.rel (%p163) target = $region24
        $region23: #{tpu_custom_call.1} parent=11 // pred_region
          _
        $region24: #{tpu_custom_call.1} parent=11 // pred_fallthru
          _
      $region12: #{tpu_custom_call.1} parent=5 // pred_fallthru
        _
      %p166 = scmp.lt.s32.totalorder %s17, 2
      // Predicated region
      $region25: #{tpu_custom_call.1} parent=5 // pred_check
        %p167 = pneg %p166
      $region26: #{tpu_custom_call.1} parent=5 // pred_check_branch
        %169 = sbr.rel (%p167) target = $region28
      $region27: #{tpu_custom_call.1} parent=5 // pred_region
        // Predicated region
        $region29: #{tpu_custom_call.1} parent=27 // pred_check
          %p170 = pneg %p37
        $region30: #{tpu_custom_call.1} parent=27 // pred_check_branch
          %172 = sbr.rel (%p170) target = $region32
        $region31: #{tpu_custom_call.1} parent=27 // pred_region
          %s173 = sand.u32 %s27, 1
          %s174 = scalar_lea.sflag [#allocation3], %s173
          %s175 = sand.u32 %s27, 1
          %s176 = smul.addr %s175, 128
          %s177 = scalar_lea.vmem [#allocation2], %s176
          %s178 = smul.u32 16, %s17
          %s180 = ssub.s32 2048, 2048
          %181 = vsyncadd %s174, %s180
          %s182 = smul.addr %s178, 2
          %s183 = smul.addr %s182, 64
          %s184 = scalar_lea.hbm %s0, %s183
          %s185 = sshll.u32 %s177, 4
          %s186 = int_to_ptr.vmem [resolvable:$true] %s185
          %191 = dma.hbm_to_vmem [thread:$0]  %s184, 2048, %s186, %s174, 128, 128, 8
        $region32: #{tpu_custom_call.1} parent=27 // pred_fallthru
          _
      $region28: #{tpu_custom_call.1} parent=5 // pred_fallthru
        _
      %p192 = scmp.le.s32.totalorder 1, %s17
      %p193 = scmp.lt.s32.totalorder %s17, 3
      %p194 = pnand %p192, %p193
      %p195 = pneg %p194
      // Predicated region
      $region33: #{tpu_custom_call.1} parent=5 // pred_check
        _
      $region34: #{tpu_custom_call.1} parent=5 // pred_check_branch
        %197 = sbr.rel (%p194) target = $region36
      $region35: #{tpu_custom_call.1} parent=5 // pred_region
        %s198 = ssub.s32 %s17, 1
        %s199 = sand.u32 %s30, 1
        %s200 = scalar_lea.sflag [#allocation3], %s199
        %s201 = sand.u32 %s30, 1
        %s202 = smul.addr %s201, 128
        %s203 = scalar_lea.vmem [#allocation2], %s202
        // Predicated region
        $region37: #{tpu_custom_call.1} parent=35 // pred_check
          %p204 = pneg %p43
        $region38: #{tpu_custom_call.1} parent=35 // pred_check_branch
          %206 = sbr.rel (%p204) target = $region40
        $region39: #{tpu_custom_call.1} parent=35 // pred_region
          %207 = dma.done %s200, 2048
        $region40: #{tpu_custom_call.1} parent=35 // pred_fallthru
          _
        // Predicated region
        $region41: #{tpu_custom_call.1} parent=35 // pred_check
          %p208 = pneg %p64
        $region42: #{tpu_custom_call.1} parent=35 // pred_check_branch
          %210 = sbr.rel (%p208) target = $region44
        $region43: #{tpu_custom_call.1} parent=35 // pred_region
          %211 = dma.done [#allocation6], 2048
        $region44: #{tpu_custom_call.1} parent=35 // pred_fallthru
          _
        %s212 = sand.u32 %s30, 1
        %s213 = scalar_lea.sflag [#allocation3], %s212
        %s214 = sand.u32 %s30, 1
        %s215 = smul.addr %s214, 128
        %s216 = scalar_lea.vmem [#allocation2], %s215
        %p217 = pneg %p43
        %p218 = pneg %p40
        %p219 = pneg %p64
        %p220 = pneg %p61
        %p221 = pneg %p85
        %p222 = pneg %p82
        %p223 = pneg %p106
        %p224 = pneg %p103
        %p225 = pneg %p132
        %p226 = pneg %p129
        %s227 = sand.u32 %s119, 1
        %s228 = scalar_lea.sflag [#allocation4], %s227
        %s229 = sand.u32 %s119, 1
        %s230 = smul.addr %s229, 128
        %s231 = scalar_lea.vmem [#allocation7], %s230
        %s232 = smul.u32 16, %s22
        %s233 = smul.u32 16, %s22
        %v235 = vld [vmem:[%s203] sm:$0xff]
        %v236 = vld [vmem:[%s203 + $0x8] sm:$0xff]
        %v237 = vld [vmem:[%s203 + $0x10] sm:$0xff]
        %v238 = vld [vmem:[%s203 + $0x18] sm:$0xff]
        %v239 = vld [vmem:[%s203 + $0x20] sm:$0xff]
        %v240 = vld [vmem:[%s203 + $0x28] sm:$0xff]
        %v241 = vld [vmem:[%s203 + $0x30] sm:$0xff]
        %v242 = vld [vmem:[%s203 + $0x38] sm:$0xff]
        %v243 = vld [vmem:[%s203 + $0x40] sm:$0xff]
        %v244 = vld [vmem:[%s203 + $0x48] sm:$0xff]
        %v245 = vld [vmem:[%s203 + $0x50] sm:$0xff]
        %v246 = vld [vmem:[%s203 + $0x58] sm:$0xff]
        %v247 = vld [vmem:[%s203 + $0x60] sm:$0xff]
        %v248 = vld [vmem:[%s203 + $0x68] sm:$0xff]
        %v249 = vld [vmem:[%s203 + $0x70] sm:$0xff]
        %v250 = vld [vmem:[%s203 + $0x78] sm:$0xff]
        %v251 = vld [vmem:[#allocation5] sm:$0xf]
        %v252 = vld [vmem:[#allocation5 + $0x4] sm:$0xf]
        %v253 = vld [vmem:[#allocation5 + $0x8] sm:$0xf]
        %v254 = vld [vmem:[#allocation5 + $0xc] sm:$0xf]
        %v255 = vld [vmem:[#allocation5 + $0x10] sm:$0xf]
        %v256 = vld [vmem:[#allocation5 + $0x14] sm:$0xf]
        %v257 = vld [vmem:[#allocation5 + $0x18] sm:$0xf]
        %v258 = vld [vmem:[#allocation5 + $0x1c] sm:$0xf]
        %v259 = vld [vmem:[#allocation5 + $0x20] sm:$0xf]
        %v260 = vld [vmem:[#allocation5 + $0x24] sm:$0xf]
        %v261 = vld [vmem:[#allocation5 + $0x28] sm:$0xf]
        %v262 = vld [vmem:[#allocation5 + $0x2c] sm:$0xf]
        %v263 = vld [vmem:[#allocation5 + $0x30] sm:$0xf]
        %v264 = vld [vmem:[#allocation5 + $0x34] sm:$0xf]
        %v265 = vld [vmem:[#allocation5 + $0x38] sm:$0xf]
        %v266 = vld [vmem:[#allocation5 + $0x3c] sm:$0xf]
        %v267 = vld [vmem:[#allocation5 + $0x40] sm:$0xf]
        %v268 = vld [vmem:[#allocation5 + $0x44] sm:$0xf]
        %v269 = vld [vmem:[#allocation5 + $0x48] sm:$0xf]
        %v270 = vld [vmem:[#allocation5 + $0x4c] sm:$0xf]
        %v271 = vld [vmem:[#allocation5 + $0x50] sm:$0xf]
        %v272 = vld [vmem:[#allocation5 + $0x54] sm:$0xf]
        %v273 = vld [vmem:[#allocation5 + $0x58] sm:$0xf]
        %v274 = vld [vmem:[#allocation5 + $0x5c] sm:$0xf]
        %v275 = vld [vmem:[#allocation5 + $0x60] sm:$0xf]
        %v276 = vld [vmem:[#allocation5 + $0x64] sm:$0xf]
        %v277 = vld [vmem:[#allocation5 + $0x68] sm:$0xf]
        %v278 = vld [vmem:[#allocation5 + $0x6c] sm:$0xf]
        %v279 = vld [vmem:[#allocation5 + $0x70] sm:$0xf]
        %v280 = vld [vmem:[#allocation5 + $0x74] sm:$0xf]
        %v281 = vld [vmem:[#allocation5 + $0x78] sm:$0xf]
        %v282 = vld [vmem:[#allocation5 + $0x7c] sm:$0xf]
        %v299 = vunpack.c.l.b16 %v235
        %v300 = vunpack.c.h.b16 %v235
        %v301 = vunpack.c.l.b16 %v236
        %v302 = vunpack.c.h.b16 %v236
        %v303 = vunpack.c.l.b16 %v237
        %v304 = vunpack.c.h.b16 %v237
        %v305 = vunpack.c.l.b16 %v238
        %v306 = vunpack.c.h.b16 %v238
        %v307 = vunpack.c.l.b16 %v239
        %v308 = vunpack.c.h.b16 %v239
        %v309 = vunpack.c.l.b16 %v240
        %v310 = vunpack.c.h.b16 %v240
        %v311 = vunpack.c.l.b16 %v241
        %v312 = vunpack.c.h.b16 %v241
        %v313 = vunpack.c.l.b16 %v242
        %v314 = vunpack.c.h.b16 %v242
        %v315 = vunpack.c.l.b16 %v243
        %v316 = vunpack.c.h.b16 %v243
        %v317 = vunpack.c.l.b16 %v244
        %v318 = vunpack.c.h.b16 %v244
        %v319 = vunpack.c.l.b16 %v245
        %v320 = vunpack.c.h.b16 %v245
        %v321 = vunpack.c.l.b16 %v246
        %v322 = vunpack.c.h.b16 %v246
        %v323 = vunpack.c.l.b16 %v247
        %v324 = vunpack.c.h.b16 %v247
        %v325 = vunpack.c.l.b16 %v248
        %v326 = vunpack.c.h.b16 %v248
        %v327 = vunpack.c.l.b16 %v249
        %v328 = vunpack.c.h.b16 %v249
        %v329 = vunpack.c.l.b16 %v250
        %v330 = vunpack.c.h.b16 %v250
        %v331 = vpack.c.b16 %v301, %v299
        %v332 = vpack.c.b16 %v302, %v300
        %v333 = vpack.c.b16 %v305, %v303
        %v334 = vpack.c.b16 %v306, %v304
        %v335 = vpack.c.b16 %v309, %v307
        %v336 = vpack.c.b16 %v310, %v308
        %v337 = vpack.c.b16 %v313, %v311
        %v338 = vpack.c.b16 %v314, %v312
        %v339 = vpack.c.b16 %v317, %v315
        %v340 = vpack.c.b16 %v318, %v316
        %v341 = vpack.c.b16 %v321, %v319
        %v342 = vpack.c.b16 %v322, %v320
        %v343 = vpack.c.b16 %v325, %v323
        %v344 = vpack.c.b16 %v326, %v324
        %v345 = vpack.c.b16 %v329, %v327
        %v346 = vpack.c.b16 %v330, %v328
        %v395 = vunpack.c.l.b16 %v251
        %v396 = vunpack.c.l.b16 %v252
        %v397 = vunpack.c.l.b16 %v253
        %v398 = vunpack.c.l.b16 %v254
        %v399 = vunpack.c.l.b16 %v255
        %v400 = vunpack.c.l.b16 %v256
        %v401 = vunpack.c.l.b16 %v257
        %v402 = vunpack.c.l.b16 %v258
        %v403 = vunpack.c.l.b16 %v259
        %v404 = vunpack.c.l.b16 %v260
        %v405 = vunpack.c.l.b16 %v261
        %v406 = vunpack.c.l.b16 %v262
        %v407 = vunpack.c.l.b16 %v263
        %v408 = vunpack.c.l.b16 %v264
        %v409 = vunpack.c.l.b16 %v265
        %v410 = vunpack.c.l.b16 %v266
        %v411 = vunpack.c.l.b16 %v267
        %v412 = vunpack.c.l.b16 %v268
        %v413 = vunpack.c.l.b16 %v269
        %v414 = vunpack.c.l.b16 %v270
        %v415 = vunpack.c.l.b16 %v271
        %v416 = vunpack.c.l.b16 %v272
        %v417 = vunpack.c.l.b16 %v273
        %v418 = vunpack.c.l.b16 %v274
        %v419 = vunpack.c.l.b16 %v275
        %v420 = vunpack.c.l.b16 %v276
        %v421 = vunpack.c.l.b16 %v277
        %v422 = vunpack.c.l.b16 %v278
        %v423 = vunpack.c.l.b16 %v279
        %v424 = vunpack.c.l.b16 %v280
        %v425 = vunpack.c.l.b16 %v281
        %v426 = vunpack.c.l.b16 %v282
        %v427 = vpack.c.b16 %v396, %v395
        %v428 = vpack.c.b16 %v398, %v397
        %v429 = vpack.c.b16 %v400, %v399
        %v430 = vpack.c.b16 %v402, %v401
        %v431 = vpack.c.b16 %v404, %v403
        %v432 = vpack.c.b16 %v406, %v405
        %v433 = vpack.c.b16 %v408, %v407
        %v434 = vpack.c.b16 %v410, %v409
        %v435 = vpack.c.b16 %v412, %v411
        %v436 = vpack.c.b16 %v414, %v413
        %v437 = vpack.c.b16 %v416, %v415
        %v438 = vpack.c.b16 %v418, %v417
        %v439 = vpack.c.b16 %v420, %v419
        %v440 = vpack.c.b16 %v422, %v421
        %v441 = vpack.c.b16 %v424, %v423
        %v442 = vpack.c.b16 %v426, %v425
        %459 = vmatprep.subr.bf16.mxu0 0
        %460 = vmatpush1.bf16.msra.mxu0 %v434
        %461 = vmatprep.subr.bf16.mxu0 0
        %462 = vmatpush1.bf16.msra.mxu0 %v433
        %463 = vmatprep.subr.bf16.mxu0 0
        %464 = vmatpush1.bf16.msra.mxu0 %v432
        %465 = vmatprep.subr.bf16.mxu0 0
        %466 = vmatpush1.bf16.msra.mxu0 %v431
        %467 = vmatprep.subr.bf16.mxu0 0
        %468 = vmatpush1.bf16.msra.mxu0 %v430
        %469 = vmatprep.subr.bf16.mxu0 0
        %470 = vmatpush1.bf16.msra.mxu0 %v429
        %471 = vmatprep.subr.bf16.mxu0 0
        %472 = vmatpush1.bf16.msra.mxu0 %v428
        %473 = vmatprep.subr.bf16.mxu0 0
        %474 = vmatpush1.bf16.msra.mxu0 %v427
        %475 = vmatprep.subr.bf16.mxu0 0
        %476 = vmatpush2.bf16.msra.mxu0 %v442
        %477 = vmatprep.subr.bf16.mxu0 0
        %478 = vmatpush2.bf16.msra.mxu0 %v441
        %479 = vmatprep.subr.bf16.mxu0 0
        %480 = vmatpush2.bf16.msra.mxu0 %v440
        %481 = vmatprep.subr.bf16.mxu0 0
        %482 = vmatpush2.bf16.msra.mxu0 %v439
        %483 = vmatprep.subr.bf16.mxu0 0
        %484 = vmatpush2.bf16.msra.mxu0 %v438
        %485 = vmatprep.subr.bf16.mxu0 0
        %486 = vmatpush2.bf16.msra.mxu0 %v437
        %487 = vmatprep.subr.bf16.mxu0 0
        %488 = vmatpush2.bf16.msra.mxu0 %v436
        %489 = vmatprep.subr.bf16.mxu0 0
        %490 = vmatpush2.bf16.msra.mxu0 %v435
        %491 = vmatprep.mubr.bf16.mxu0 %v332
        %492 = vmatmul.mubr.bf16.gmra.mxu0 %v331
        %v493 = vpop.f32.mrf.mxu0
        %v494 = vadd.f32 0.0, %v493
        %v495 = vpop.f32.mrf.mxu0
        %v496 = vpop.f32.mrf.mxu0
        %v497 = vadd.f32 0.0, %v496
        %v498 = vpop.f32.mrf.mxu0
        %499 = vmatprep.mubr.bf16.mxu0 %v334
        %500 = vmatmul.mubr.bf16.gmra.mxu0 %v333
        %v501 = vpop.f32.mrf.mxu0
        %v502 = vadd.f32 0.0, %v501
        %v503 = vpop.f32.mrf.mxu0
        %v504 = vpop.f32.mrf.mxu0
        %v505 = vadd.f32 0.0, %v504
        %v506 = vpop.f32.mrf.mxu0
        %507 = vmatprep.mubr.bf16.mxu0 %v336
        %508 = vmatmul.mubr.bf16.gmra.mxu0 %v335
        %v509 = vpop.f32.mrf.mxu0
        %v510 = vadd.f32 0.0, %v509
        %v511 = vpop.f32.mrf.mxu0
        %v512 = vpop.f32.mrf.mxu0
        %v513 = vadd.f32 0.0, %v512
        %v514 = vpop.f32.mrf.mxu0
        %515 = vmatprep.mubr.bf16.mxu0 %v338
        %516 = vmatmul.mubr.bf16.gmra.mxu0 %v337
        %v517 = vpop.f32.mrf.mxu0
        %v518 = vadd.f32 0.0, %v517
        %v519 = vpop.f32.mrf.mxu0
        %v520 = vpop.f32.mrf.mxu0
        %v521 = vadd.f32 0.0, %v520
        %v522 = vpop.f32.mrf.mxu0
        %523 = vmatprep.mubr.bf16.mxu0 %v340
        %524 = vmatmul.mubr.bf16.gmra.mxu0 %v339
        %v525 = vpop.f32.mrf.mxu0
        %v526 = vadd.f32 0.0, %v525
        %v527 = vpop.f32.mrf.mxu0
        %v528 = vpop.f32.mrf.mxu0
        %v529 = vadd.f32 0.0, %v528
        %v530 = vpop.f32.mrf.mxu0
        %531 = vmatprep.mubr.bf16.mxu0 %v342
        %532 = vmatmul.mubr.bf16.gmra.mxu0 %v341
        %v533 = vpop.f32.mrf.mxu0
        %v534 = vadd.f32 0.0, %v533
        %v535 = vpop.f32.mrf.mxu0
        %v536 = vpop.f32.mrf.mxu0
        %v537 = vadd.f32 0.0, %v536
        %v538 = vpop.f32.mrf.mxu0
        %539 = vmatprep.mubr.bf16.mxu0 %v344
        %540 = vmatmul.mubr.bf16.gmra.mxu0 %v343
        %v541 = vpop.f32.mrf.mxu0
        %v542 = vadd.f32 0.0, %v541
        %v543 = vpop.f32.mrf.mxu0
        %v544 = vpop.f32.mrf.mxu0
        %v545 = vadd.f32 0.0, %v544
        %v546 = vpop.f32.mrf.mxu0
        %547 = vmatprep.mubr.bf16.mxu0 %v346
        %548 = vmatmul.mubr.bf16.gmra.mxu0 %v345
        %v549 = vpop.f32.mrf.mxu0
        %v550 = vadd.f32 0.0, %v549
        %v551 = vpop.f32.mrf.mxu0
        %v552 = vpop.f32.mrf.mxu0
        %v553 = vadd.f32 0.0, %v552
        %v554 = vpop.f32.mrf.mxu0
        %555 = vdwg.mxu0
        %v556 = vld [vmem:[%s2] sm:$0x1]
        %v558 = vlaneseq
        %v559 = vshrl.u32 %v558, 7
        %v560 = vsub.s32 0, %v559
        %v561 = vrot.slane %v556, %v560
        %v563 = vmul.f32 %v494, %v561
        %v564 = vmul.f32 %v497, %v561
        %v565 = vmul.f32 %v502, %v561
        %v566 = vmul.f32 %v505, %v561
        %v567 = vmul.f32 %v510, %v561
        %v568 = vmul.f32 %v513, %v561
        %v569 = vmul.f32 %v518, %v561
        %v570 = vmul.f32 %v521, %v561
        %v571 = vmul.f32 %v526, %v561
        %v572 = vmul.f32 %v529, %v561
        %v573 = vmul.f32 %v534, %v561
        %v574 = vmul.f32 %v537, %v561
        %v575 = vmul.f32 %v542, %v561
        %v576 = vmul.f32 %v545, %v561
        %v577 = vmul.f32 %v550, %v561
        %v578 = vmul.f32 %v553, %v561
        %v579 = vld [vmem:[%s3] sm:$0x1]
        %v581 = vlaneseq
        %v582 = vshrl.u32 %v581, 7
        %v583 = vsub.s32 0, %v582
        %v584 = vrot.slane %v579, %v583
        %v586 = vadd.f32 %v563, %v584
        %v587 = vadd.f32 %v564, %v584
        %v588 = vadd.f32 %v565, %v584
        %v589 = vadd.f32 %v566, %v584
        %v590 = vadd.f32 %v567, %v584
        %v591 = vadd.f32 %v568, %v584
        %v592 = vadd.f32 %v569, %v584
        %v593 = vadd.f32 %v570, %v584
        %v594 = vadd.f32 %v571, %v584
        %v595 = vadd.f32 %v572, %v584
        %v596 = vadd.f32 %v573, %v584
        %v597 = vadd.f32 %v574, %v584
        %v598 = vadd.f32 %v575, %v584
        %v599 = vadd.f32 %v576, %v584
        %v600 = vadd.f32 %v577, %v584
        %v601 = vadd.f32 %v578, %v584
        %v602 = vmax.f32 %v586, 0.0
        %v603 = vmax.f32 %v587, 0.0
        %v604 = vmax.f32 %v588, 0.0
        %v605 = vmax.f32 %v589, 0.0
        %v606 = vmax.f32 %v590, 0.0
        %v607 = vmax.f32 %v591, 0.0
        %v608 = vmax.f32 %v592, 0.0
        %v609 = vmax.f32 %v593, 0.0
        %v610 = vmax.f32 %v594, 0.0
        %v611 = vmax.f32 %v595, 0.0
        %v612 = vmax.f32 %v596, 0.0
        %v613 = vmax.f32 %v597, 0.0
        %v614 = vmax.f32 %v598, 0.0
        %v615 = vmax.f32 %v599, 0.0
        %v616 = vmax.f32 %v600, 0.0
        %v617 = vmax.f32 %v601, 0.0
        %618 = vst [vmem:[%s231] sm:$0xff] %v602
        %619 = vst [vmem:[%s231 + $0x8] sm:$0xff] %v603
        %620 = vst [vmem:[%s231 + $0x10] sm:$0xff] %v604
        %621 = vst [vmem:[%s231 + $0x18] sm:$0xff] %v605
        %622 = vst [vmem:[%s231 + $0x20] sm:$0xff] %v606
        %623 = vst [vmem:[%s231 + $0x28] sm:$0xff] %v607
        %624 = vst [vmem:[%s231 + $0x30] sm:$0xff] %v608
        %625 = vst [vmem:[%s231 + $0x38] sm:$0xff] %v609
        %626 = vst [vmem:[%s231 + $0x40] sm:$0xff] %v610
        %627 = vst [vmem:[%s231 + $0x48] sm:$0xff] %v611
        %628 = vst [vmem:[%s231 + $0x50] sm:$0xff] %v612
        %629 = vst [vmem:[%s231 + $0x58] sm:$0xff] %v613
        %630 = vst [vmem:[%s231 + $0x60] sm:$0xff] %v614
        %631 = vst [vmem:[%s231 + $0x68] sm:$0xff] %v615
        %632 = vst [vmem:[%s231 + $0x70] sm:$0xff] %v616
        %633 = vst [vmem:[%s231 + $0x78] sm:$0xff] %v617
        %s634 = sand.u32 %s119, 1
        %s635 = scalar_lea.sflag [#allocation4], %s634
        %s636 = sand.u32 %s119, 1
        %s637 = smul.addr %s636, 128
        %s638 = scalar_lea.vmem [#allocation7], %s637
        // Predicated region
        $region45: #{tpu_custom_call.1} parent=35 // pred_check
          %p639 = pneg %p129
        $region46: #{tpu_custom_call.1} parent=35 // pred_check_branch
          %641 = sbr.rel (%p639) target = $region48
        $region47: #{tpu_custom_call.1} parent=35 // pred_region
          %s642 = smul.u32 16, %s22
          %s644 = ssub.s32 2048, 2048
          %645 = vsyncadd %s635, %s644
          %s646 = smul.addr %s642, 128
          %s647 = scalar_lea.hbm %s4, %s646
          %s648 = sshll.u32 %s638, 4
          %s649 = int_to_ptr.vmem [resolvable:$true] %s648
          %654 = dma.vmem_to_hbm [thread:$0]  %s649, 2048, %s647, %s635, 128, 128, 8
        $region48: #{tpu_custom_call.1} parent=35 // pred_fallthru
          _
      $region36: #{tpu_custom_call.1} parent=5 // pred_fallthru
        _
      %p655 = scmp.le.s32.totalorder 2, %s17
      // Predicated region
      $region49: #{tpu_custom_call.1} parent=5 // pred_check
        %p656 = pneg %p655
      $region50: #{tpu_custom_call.1} parent=5 // pred_check_branch
        %658 = sbr.rel (%p656) target = $region52
      $region51: #{tpu_custom_call.1} parent=5 // pred_region
        %s659 = ssub.s32 %s17, 2
        // Predicated region
        $region53: #{tpu_custom_call.1} parent=51 // pred_check
          %p660 = pneg %p135
        $region54: #{tpu_custom_call.1} parent=51 // pred_check_branch
          %662 = sbr.rel (%p660) target = $region56
        $region55: #{tpu_custom_call.1} parent=51 // pred_region
          %s663 = sand.u32 %s120, 1
          %s664 = scalar_lea.sflag [#allocation4], %s663
          %s665 = sand.u32 %s120, 1
          %s666 = smul.addr %s665, 128
          %s667 = scalar_lea.vmem [#allocation7], %s666
          %668 = dma.done %s664, 2048
        $region56: #{tpu_custom_call.1} parent=51 // pred_fallthru
          _
      $region52: #{tpu_custom_call.1} parent=5 // pred_fallthru
        _
    $region6: #{tpu_custom_call.1} parent=1 // loop_footer
      %s21 = sadd.s32 1, %s17
    $region7: #{tpu_custom_call.1} parent=1 // loop_footer_branch
      %16 = sbr.rel target = $region3
    $region8: #{tpu_custom_call.1} parent=1 // loop_exit
      _
    %669 = vsyncpa [#allocation3], 1
    %s670 = scalar_lea.sflag [#allocation3], 1
    %671 = vsyncpa %s670, 1
    %672 = vsyncpa [#allocation6], 1
    %673 = vsyncpa [#allocation4], 1
    %s674 = scalar_lea.sflag [#allocation4], 1
    %675 = vsyncpa %s674, 1

</llo_original>
